<compile_context>
chip_gen: v5e
topology: v5e:2x2
jax: 0.10.0
libtpu: 0.0.40
codegen_flags: <defaults>
</compile_context>

<pallas_src>
import math

import jax
import jax.numpy as jnp
from jax import lax
from jax.experimental import pallas as pl
from jax.experimental.pallas import tpu as pltpu

# ----- static configuration (small shapes consistent with the module) -----
B, S, H = 2, 8, 44          # batch, seq, f_hidden_size (44 -> DWT low band of width 22)
NUM_HEADS = 2
HEAD_DIM = H // NUM_HEADS   # 22
YL = H // 2                 # 22  (Haar low/high band width)
EPS = 1e-12
ALPHA = 0.7
INV_SQRT_HD = 1.0 / math.sqrt(HEAD_DIM)


def _layernorm(x, w, b):
    u = jnp.mean(x, axis=-1, keepdims=True)
    s = jnp.mean((x - u) ** 2, axis=-1, keepdims=True)
    return w * (x - u) * lax.rsqrt(s + EPS) + b


def wavelet_mm_kernel(x_ref, mask_ref, w_ref, v_ref, o_ref):
    f32 = jnp.float32
    x = x_ref[0].astype(f32)          # (S, H)
    mask = mask_ref[0].astype(f32)    # (1, S) additive mask, broadcasts over query rows

    Wslab = w_ref[...]                # (H, 5H)  = [ W_qkv (H,3H) | Wd (H,H) | W_wav (H,H) ]
    Vslab = v_ref[...]                # (3, 3H)  = biases / LayerNorm params

    W_qkv = Wslab[:, 0:3 * H]         # (H, 3H)
    Wd    = Wslab[:, 3 * H:4 * H]     # (H, H)
    W_wav = Wslab[:, 4 * H:5 * H]     # (H, H)

    b_qkv = Vslab[0:1, :]             # (1, 3H)
    bd    = Vslab[1:2, 0:H]
    lna_w = Vslab[1:2, H:2 * H]
    lna_b = Vslab[1:2, 2 * H:3 * H]
    b_wav = Vslab[2:3, 0:H]
    lnw_w = Vslab[2:3, H:2 * H]
    lnw_b = Vslab[2:3, 2 * H:3 * H]

    # -------- MultiHeadAttention branch: one fused QKV matmul --------
    qkv = jnp.dot(x, W_qkv, preferred_element_type=f32) + b_qkv   # (S, 3H)
    ctx_heads = []
    for h in range(NUM_HEADS):        # static unroll (tiny trip count)
        lo = h * HEAD_DIM
        qh = qkv[:, lo:lo + HEAD_DIM]                 # (S, hd)
        kh = qkv[:, H + lo:H + lo + HEAD_DIM]         # (S, hd)
        vh = qkv[:, 2 * H + lo:2 * H + lo + HEAD_DIM] # (S, hd)
        # contract last dims of q and k directly (no explicit transpose)
        scores = lax.dot_general(qh, kh, (((1,), (1,)), ((), ())),
                                 preferred_element_type=f32) * INV_SQRT_HD  # (S, S)
        scores = scores + mask
        scores = scores - jnp.max(scores, axis=-1, keepdims=True)
        p = jnp.exp(scores)
        p = p * pl.reciprocal(jnp.sum(p, axis=-1, keepdims=True), approx=True)
        ctx_heads.append(jnp.dot(p, vh, preferred_element_type=f32))        # (S, hd)
    ctx = jnp.concatenate(ctx_heads, axis=-1)                               # (S, H)
    hid_a = jnp.dot(ctx, Wd, preferred_element_type=f32) + bd
    out_a = _layernorm(hid_a + x, lna_w, lna_b)

    # -------- WaveletLayer branch collapsed to one 44x44 matmul --------
    rec = jnp.dot(x, W_wav, preferred_element_type=f32) + b_wav             # (S, H)
    out_w = _layernorm(rec + x, lnw_w, lnw_b)

    # -------- blend --------
    o_ref[0] = (ALPHA * out_w + (1.0 - ALPHA) * out_a).astype(o_ref.dtype)


def wavelet_mm_layer(x, mask3, w_slab, v_slab):
    """x: (B,S,H) f32; mask3: (B,1,S) f32 additive mask; w_slab: (H,5H); v_slab: (3,3H)."""
    return pl.pallas_call(
        wavelet_mm_kernel,
        out_shape=jax.ShapeDtypeStruct((B, S, H), jnp.float32),
        grid=(B,),
        in_specs=[
            pl.BlockSpec((1, S, H), lambda b: (b, 0, 0)),
            pl.BlockSpec((1, 1, S), lambda b: (b, 0, 0)),
            pl.BlockSpec((H, 5 * H), lambda b: (0, 0)),      # params: constant block
            pl.BlockSpec((3, 3 * H), lambda b: (0, 0)),      # params: constant block
        ],
        out_specs=pl.BlockSpec((1, S, H), lambda b: (b, 0, 0)),
        compiler_params=pltpu.CompilerParams(dimension_semantics=("parallel",)),
    )(x, mask3, w_slab, v_slab)


def build_params(key):
    ks = jax.random.split(key, 16)
    sc = 0.08
    f32 = jnp.float32
    # attention weights (stored as (in, out) so kernel computes x @ W + b)
    Wq = jax.random.normal(ks[0], (H, H), f32) * sc
    bq = jax.random.normal(ks[1], (H,), f32) * 0.01
    Wk = jax.random.normal(ks[2], (H, H), f32) * sc
    bk = jax.random.normal(ks[3], (H,), f32) * 0.01
    Wv = jax.random.normal(ks[4], (H, H), f32) * sc
    bv = jax.random.normal(ks[5], (H,), f32) * 0.01
    Wd = jax.random.normal(ks[6], (H, H), f32) * sc
    bd = jax.random.normal(ks[7], (H,), f32) * 0.01
    lna_w = jnp.ones((H,), f32)
    lna_b = jnp.zeros((H,), f32)
    # wavelet low-frequency transform (Linear(22, 22)) and its LayerNorm
    Wlf = jax.random.normal(ks[8], (YL, YL), f32) * sc
    blf = jax.random.normal(ks[9], (YL,), f32) * 0.01
    lnw_w = jnp.ones((H,), f32)
    lnw_b = jnp.zeros((H,), f32)
    # Haar analysis matrices: yl = x @ Dl, yh = x @ Dh ; reconstruction via transposes
    r = 1.0 / math.sqrt(2.0)
    Dl = jnp.zeros((H, YL), f32)
    Dh = jnp.zeros((H, YL), f32)
    idx = jnp.arange(YL)
    Dl = Dl.at[2 * idx, idx].set(r).at[2 * idx + 1, idx].set(r)
    Dh = Dh.at[2 * idx, idx].set(r).at[2 * idx + 1, idx].set(-r)

    full = dict(Wq=Wq, bq=bq, Wk=Wk, bk=bk, Wv=Wv, bv=bv, Wd=Wd, bd=bd,
                lna_w=lna_w, lna_b=lna_b, Wlf=Wlf, blf=blf,
                lnw_w=lnw_w, lnw_b=lnw_b, Dl=Dl, Dh=Dh)

    # ---- packed kernel parameters (2 slabs) ----
    # Fused QKV projection and algebraically collapsed wavelet transform.
    W_qkv = jnp.concatenate([Wq, Wk, Wv], axis=1)                 # (H, 3H)
    W_wav = Dl @ Wlf @ Dl.T + Dh @ Dh.T                           # (H, H)
    b_wav = blf @ Dl.T                                            # (H,)
    w_slab = jnp.concatenate([W_qkv, Wd, W_wav], axis=1)          # (H, 5H)

    b_qkv = jnp.concatenate([bq, bk, bv])                         # (3H,)
    row1 = jnp.concatenate([bd, lna_w, lna_b])                    # (3H,)
    row2 = jnp.concatenate([b_wav, lnw_w, lnw_b])                 # (3H,)
    v_slab = jnp.stack([b_qkv, row1, row2], axis=0)               # (3, 3H)

    return full, w_slab, v_slab


def reference_forward(x, mask3, p):
    """Pure-JAX reference mirroring the PyTorch forward (dropout = identity),
    using the UNfused / UNcollapsed parameters to validate the kernel's algebra."""
    def ln(t, w, b):
        u = jnp.mean(t, axis=-1, keepdims=True)
        s = jnp.mean((t - u) ** 2, axis=-1, keepdims=True)
        return w * (t - u) / jnp.sqrt(s + EPS) + b

    # attention
    q = x @ p['Wq'] + p['bq']
    k = x @ p['Wk'] + p['bk']
    v = x @ p['Wv'] + p['bv']

    def split(t):
        return t.reshape(B, S, NUM_HEADS, HEAD_DIM).transpose(0, 2, 1, 3)

    qh, kh, vh = split(q), split(k), split(v)
    scores = jnp.einsum('bhqd,bhkd->bhqk', qh, kh) / math.sqrt(HEAD_DIM)
    scores = scores + mask3[:, :, None, :]          # (B,1,1,S) broadcast
    probs = jax.nn.softmax(scores, axis=-1)
    ctx = jnp.einsum('bhqk,bhkd->bhqd', probs, vh).transpose(0, 2, 1, 3).reshape(B, S, H)
    hid_a = ctx @ p['Wd'] + p['bd']
    out_a = ln(hid_a + x, p['lna_w'], p['lna_b'])

    # wavelet
    yl = x @ p['Dl']
    yh = x @ p['Dh']
    yl_t = yl @ p['Wlf'] + p['blf']
    rec = yl_t @ p['Dl'].T + yh @ p['Dh'].T
    out_w = ln(rec + x, p['lnw_w'], p['lnw_b'])

    return ALPHA * out_w + (1.0 - ALPHA) * out_a


if __name__ == "__main__":
    key = jax.random.PRNGKey(0)
    k_x, k_p = jax.random.split(key)

    # multi_feature: [B, S, H]; multi_mask: [B, 1, 1, S] additive mask (0 keep / -1e4 pad)
    x = jax.random.normal(k_x, (B, S, H), jnp.float32)
    keep = jnp.array([[1.0] * S,
                      [1.0] * (S - 2) + [0.0, 0.0]], dtype=jnp.float32)   # (B, S)
    multi_mask = ((1.0 - keep) * -10000.0)[:, None, None, :]              # (B,1,1,S)
    mask3 = multi_mask.reshape(B, 1, S)                                   # kernel layout

    full_params, w_slab, v_slab = build_params(k_p)

    out = wavelet_mm_layer(x, mask3, w_slab, v_slab)
    out = jax.block_until_ready(out)

    ref = reference_forward(x, mask3, full_params)
    assert out.shape == (B, S, H)
    # approx reciprocal in softmax -> ~1e-4 rel error; 1e-3 is tight yet safe.
    assert jnp.allclose(out, ref, atol=1e-3, rtol=1e-3), "mismatch vs. JAX reference"

    print("KERNEL_OK")
</pallas_src>

<mosaic_0001>
module attributes {stable_mosaic.version = 11 : i64} {
  func.func @wavelet_mm_kernel(%arg0: i32, %arg1: memref<1x8x44xf32, #tpu.memory_space<vmem>>, %arg2: memref<1x1x8xf32, #tpu.memory_space<vmem>>, %arg3: memref<44x220xf32, #tpu.memory_space<vmem>>, %arg4: memref<3x132xf32, #tpu.memory_space<vmem>>, %arg5: memref<1x8x44xf32, #tpu.memory_space<vmem>>) attributes {dimension_semantics = [#tpu.dimension_semantics<parallel>], iteration_bounds = array<i64: 2>, scalar_prefetch = 0 : i64, scratch_operands = 0 : i64, tpu.core_type = #tpu.core_type<tc>, window_params = [{transform_indices = @transform_0, window_bounds = array<i64: 1, 8, 44>}, {transform_indices = @transform_1, window_bounds = array<i64: 1, 1, 8>}, {pipeline_mode = #tpu.pipeline_mode<synchronous>, transform_indices = @transform_2, window_bounds = array<i64: 44, 220>}, {pipeline_mode = #tpu.pipeline_mode<synchronous>, transform_indices = @transform_3, window_bounds = array<i64: 3, 132>}, {transform_indices = @transform_4, window_bounds = array<i64: 1, 8, 44>}]} {
    %c0 = arith.constant 0 : index
    %c0_0 = arith.constant 0 : index
    %c0_1 = arith.constant 0 : index
    %0 = vector.load %arg1[%c0, %c0_0, %c0_1] : memref<1x8x44xf32, #tpu.memory_space<vmem>>, vector<1x8x44xf32>
    %1 = vector.shape_cast %0 : vector<1x8x44xf32> to vector<8x44xf32>
    %c0_2 = arith.constant 0 : index
    %c0_3 = arith.constant 0 : index
    %c0_4 = arith.constant 0 : index
    %2 = vector.load %arg2[%c0_2, %c0_3, %c0_4] : memref<1x1x8xf32, #tpu.memory_space<vmem>>, vector<1x1x8xf32>
    %3 = vector.shape_cast %2 : vector<1x1x8xf32> to vector<1x8xf32>
    %c0_5 = arith.constant 0 : index
    %c0_6 = arith.constant 0 : index
    %4 = vector.load %arg3[%c0_5, %c0_6] : memref<44x220xf32, #tpu.memory_space<vmem>>, vector<44x220xf32>
    %c0_7 = arith.constant 0 : index
    %c0_8 = arith.constant 0 : index
    %5 = vector.load %arg4[%c0_7, %c0_8] : memref<3x132xf32, #tpu.memory_space<vmem>>, vector<3x132xf32>
    %6 = vector.extract_strided_slice %4 {offsets = [0, 0], sizes = [44, 132], strides = [1, 1]} : vector<44x220xf32> to vector<44x132xf32>
    %7 = vector.extract_strided_slice %4 {offsets = [0, 132], sizes = [44, 44], strides = [1, 1]} : vector<44x220xf32> to vector<44x44xf32>
    %8 = vector.extract_strided_slice %4 {offsets = [0, 176], sizes = [44, 44], strides = [1, 1]} : vector<44x220xf32> to vector<44x44xf32>
    %9 = vector.extract_strided_slice %5 {offsets = [0, 0], sizes = [1, 132], strides = [1, 1]} : vector<3x132xf32> to vector<1x132xf32>
    %10 = vector.extract_strided_slice %5 {offsets = [1, 0], sizes = [1, 44], strides = [1, 1]} : vector<3x132xf32> to vector<1x44xf32>
    %11 = vector.extract_strided_slice %5 {offsets = [1, 44], sizes = [1, 44], strides = [1, 1]} : vector<3x132xf32> to vector<1x44xf32>
    %12 = vector.extract_strided_slice %5 {offsets = [1, 88], sizes = [1, 44], strides = [1, 1]} : vector<3x132xf32> to vector<1x44xf32>
    %13 = vector.extract_strided_slice %5 {offsets = [2, 0], sizes = [1, 44], strides = [1, 1]} : vector<3x132xf32> to vector<1x44xf32>
    %14 = vector.extract_strided_slice %5 {offsets = [2, 44], sizes = [1, 44], strides = [1, 1]} : vector<3x132xf32> to vector<1x44xf32>
    %15 = vector.extract_strided_slice %5 {offsets = [2, 88], sizes = [1, 44], strides = [1, 1]} : vector<3x132xf32> to vector<1x44xf32>
    %cst = arith.constant dense<0.000000e+00> : vector<8x132xf32>
    %16 = tpu.matmul %1, %6, %cst {dimension_numbers = #tpu.dot_dimension_numbers<[1], [0], [0], [1], [0, 0, 1, 1], [], []>} : vector<8x44xf32>, vector<44x132xf32>, vector<8x132xf32> -> vector<8x132xf32>
    %17 = vector.broadcast %9 : vector<1x132xf32> to vector<8x132xf32>
    %18 = arith.addf %16, %17 : vector<8x132xf32>
    %19 = vector.extract_strided_slice %18 {offsets = [0, 0], sizes = [8, 22], strides = [1, 1]} : vector<8x132xf32> to vector<8x22xf32>
    %20 = vector.extract_strided_slice %18 {offsets = [0, 44], sizes = [8, 22], strides = [1, 1]} : vector<8x132xf32> to vector<8x22xf32>
    %21 = vector.extract_strided_slice %18 {offsets = [0, 88], sizes = [8, 22], strides = [1, 1]} : vector<8x132xf32> to vector<8x22xf32>
    %cst_9 = arith.constant dense<0.000000e+00> : vector<8x8xf32>
    %22 = tpu.matmul %19, %20, %cst_9 {dimension_numbers = #tpu.dot_dimension_numbers<[1], [1], [0], [0], [0, 0, 1, 0], [], []>} : vector<8x22xf32>, vector<8x22xf32>, vector<8x8xf32> -> vector<8x8xf32>
    %cst_10 = arith.constant 0.213200718 : f32
    %23 = vector.broadcast %cst_10 : f32 to vector<8x8xf32>
    %24 = arith.mulf %22, %23 : vector<8x8xf32>
    %25 = vector.broadcast %3 : vector<1x8xf32> to vector<8x8xf32>
    %26 = arith.addf %24, %25 : vector<8x8xf32>
    %cst_11 = arith.constant dense<0xFF800000> : vector<8xf32>
    %27 = vector.multi_reduction <maximumf>, %26, %cst_11 [1] : vector<8x8xf32> to vector<8xf32>
    %28 = vector.shape_cast %27 : vector<8xf32> to vector<8x1xf32>
    %29 = vector.broadcast %28 : vector<8x1xf32> to vector<8x8xf32>
    %30 = arith.subf %26, %29 : vector<8x8xf32>
    %31 = math.exp %30 : vector<8x8xf32>
    %cst_12 = arith.constant dense<0.000000e+00> : vector<8xf32>
    %32 = vector.multi_reduction <add>, %31, %cst_12 [1] : vector<8x8xf32> to vector<8xf32>
    %33 = vector.shape_cast %32 : vector<8xf32> to vector<8x1xf32>
    %34 = tpu.reciprocal %33 {approx = true} : vector<8x1xf32> -> vector<8x1xf32>
    %35 = vector.broadcast %34 : vector<8x1xf32> to vector<8x8xf32>
    %36 = arith.mulf %31, %35 : vector<8x8xf32>
    %cst_13 = arith.constant dense<0.000000e+00> : vector<8x22xf32>
    %37 = tpu.matmul %36, %21, %cst_13 {dimension_numbers = #tpu.dot_dimension_numbers<[1], [0], [0], [1], [0, 0, 1, 1], [], []>} : vector<8x8xf32>, vector<8x22xf32>, vector<8x22xf32> -> vector<8x22xf32>
    %38 = vector.extract_strided_slice %18 {offsets = [0, 22], sizes = [8, 22], strides = [1, 1]} : vector<8x132xf32> to vector<8x22xf32>
    %39 = vector.extract_strided_slice %18 {offsets = [0, 66], sizes = [8, 22], strides = [1, 1]} : vector<8x132xf32> to vector<8x22xf32>
    %40 = vector.extract_strided_slice %18 {offsets = [0, 110], sizes = [8, 22], strides = [1, 1]} : vector<8x132xf32> to vector<8x22xf32>
    %cst_14 = arith.constant dense<0.000000e+00> : vector<8x8xf32>
    %41 = tpu.matmul %38, %39, %cst_14 {dimension_numbers = #tpu.dot_dimension_numbers<[1], [1], [0], [0], [0, 0, 1, 0], [], []>} : vector<8x22xf32>, vector<8x22xf32>, vector<8x8xf32> -> vector<8x8xf32>
    %cst_15 = arith.constant 0.213200718 : f32
    %42 = vector.broadcast %cst_15 : f32 to vector<8x8xf32>
    %43 = arith.mulf %41, %42 : vector<8x8xf32>
    %44 = vector.broadcast %3 : vector<1x8xf32> to vector<8x8xf32>
    %45 = arith.addf %43, %44 : vector<8x8xf32>
    %cst_16 = arith.constant dense<0xFF800000> : vector<8xf32>
    %46 = vector.multi_reduction <maximumf>, %45, %cst_16 [1] : vector<8x8xf32> to vector<8xf32>
    %47 = vector.shape_cast %46 : vector<8xf32> to vector<8x1xf32>
    %48 = vector.broadcast %47 : vector<8x1xf32> to vector<8x8xf32>
    %49 = arith.subf %45, %48 : vector<8x8xf32>
    %50 = math.exp %49 : vector<8x8xf32>
    %cst_17 = arith.constant dense<0.000000e+00> : vector<8xf32>
    %51 = vector.multi_reduction <add>, %50, %cst_17 [1] : vector<8x8xf32> to vector<8xf32>
    %52 = vector.shape_cast %51 : vector<8xf32> to vector<8x1xf32>
    %53 = tpu.reciprocal %52 {approx = true} : vector<8x1xf32> -> vector<8x1xf32>
    %54 = vector.broadcast %53 : vector<8x1xf32> to vector<8x8xf32>
    %55 = arith.mulf %50, %54 : vector<8x8xf32>
    %cst_18 = arith.constant dense<0.000000e+00> : vector<8x22xf32>
    %56 = tpu.matmul %55, %40, %cst_18 {dimension_numbers = #tpu.dot_dimension_numbers<[1], [0], [0], [1], [0, 0, 1, 1], [], []>} : vector<8x8xf32>, vector<8x22xf32>, vector<8x22xf32> -> vector<8x22xf32>
    %57 = tpu.concatenate %37, %56 in 1 : vector<8x22xf32>, vector<8x22xf32> -> vector<8x44xf32>
    %cst_19 = arith.constant dense<0.000000e+00> : vector<8x44xf32>
    %58 = tpu.matmul %57, %7, %cst_19 {dimension_numbers = #tpu.dot_dimension_numbers<[1], [0], [0], [1], [0, 0, 1, 1], [], []>} : vector<8x44xf32>, vector<44x44xf32>, vector<8x44xf32> -> vector<8x44xf32>
    %59 = vector.broadcast %10 : vector<1x44xf32> to vector<8x44xf32>
    %60 = arith.addf %58, %59 : vector<8x44xf32>
    %61 = arith.addf %60, %1 : vector<8x44xf32>
    %cst_20 = arith.constant dense<0.000000e+00> : vector<8xf32>
    %62 = vector.multi_reduction <add>, %61, %cst_20 [1] : vector<8x44xf32> to vector<8xf32>
    %63 = vector.shape_cast %62 : vector<8xf32> to vector<8x1xf32>
    %cst_21 = arith.constant 4.400000e+01 : f32
    %64 = vector.broadcast %cst_21 : f32 to vector<8x1xf32>
    %65 = arith.divf %63, %64 : vector<8x1xf32>
    %66 = vector.broadcast %65 : vector<8x1xf32> to vector<8x44xf32>
    %67 = arith.subf %61, %66 : vector<8x44xf32>
    %68 = arith.mulf %67, %67 : vector<8x44xf32>
    %cst_22 = arith.constant dense<0.000000e+00> : vector<8xf32>
    %69 = vector.multi_reduction <add>, %68, %cst_22 [1] : vector<8x44xf32> to vector<8xf32>
    %70 = vector.shape_cast %69 : vector<8xf32> to vector<8x1xf32>
    %cst_23 = arith.constant 4.400000e+01 : f32
    %71 = vector.broadcast %cst_23 : f32 to vector<8x1xf32>
    %72 = arith.divf %70, %71 : vector<8x1xf32>
    %73 = vector.broadcast %65 : vector<8x1xf32> to vector<8x44xf32>
    %74 = arith.subf %61, %73 : vector<8x44xf32>
    %75 = vector.broadcast %11 : vector<1x44xf32> to vector<8x44xf32>
    %76 = arith.mulf %75, %74 : vector<8x44xf32>
    %cst_24 = arith.constant 9.99999996E-13 : f32
    %77 = vector.broadcast %cst_24 : f32 to vector<8x1xf32>
    %78 = arith.addf %72, %77 : vector<8x1xf32>
    %79 = math.rsqrt %78 : vector<8x1xf32>
    %80 = vector.broadcast %79 : vector<8x1xf32> to vector<8x44xf32>
    %81 = arith.mulf %76, %80 : vector<8x44xf32>
    %82 = vector.broadcast %12 : vector<1x44xf32> to vector<8x44xf32>
    %83 = arith.addf %81, %82 : vector<8x44xf32>
    %cst_25 = arith.constant dense<0.000000e+00> : vector<8x44xf32>
    %84 = tpu.matmul %1, %8, %cst_25 {dimension_numbers = #tpu.dot_dimension_numbers<[1], [0], [0], [1], [0, 0, 1, 1], [], []>} : vector<8x44xf32>, vector<44x44xf32>, vector<8x44xf32> -> vector<8x44xf32>
    %85 = vector.broadcast %13 : vector<1x44xf32> to vector<8x44xf32>
    %86 = arith.addf %84, %85 : vector<8x44xf32>
    %87 = arith.addf %86, %1 : vector<8x44xf32>
    %cst_26 = arith.constant dense<0.000000e+00> : vector<8xf32>
    %88 = vector.multi_reduction <add>, %87, %cst_26 [1] : vector<8x44xf32> to vector<8xf32>
    %89 = vector.shape_cast %88 : vector<8xf32> to vector<8x1xf32>
    %cst_27 = arith.constant 4.400000e+01 : f32
    %90 = vector.broadcast %cst_27 : f32 to vector<8x1xf32>
    %91 = arith.divf %89, %90 : vector<8x1xf32>
    %92 = vector.broadcast %91 : vector<8x1xf32> to vector<8x44xf32>
    %93 = arith.subf %87, %92 : vector<8x44xf32>
    %94 = arith.mulf %93, %93 : vector<8x44xf32>
    %cst_28 = arith.constant dense<0.000000e+00> : vector<8xf32>
    %95 = vector.multi_reduction <add>, %94, %cst_28 [1] : vector<8x44xf32> to vector<8xf32>
    %96 = vector.shape_cast %95 : vector<8xf32> to vector<8x1xf32>
    %cst_29 = arith.constant 4.400000e+01 : f32
    %97 = vector.broadcast %cst_29 : f32 to vector<8x1xf32>
    %98 = arith.divf %96, %97 : vector<8x1xf32>
    %99 = vector.broadcast %91 : vector<8x1xf32> to vector<8x44xf32>
    %100 = arith.subf %87, %99 : vector<8x44xf32>
    %101 = vector.broadcast %14 : vector<1x44xf32> to vector<8x44xf32>
    %102 = arith.mulf %101, %100 : vector<8x44xf32>
    %cst_30 = arith.constant 9.99999996E-13 : f32
    %103 = vector.broadcast %cst_30 : f32 to vector<8x1xf32>
    %104 = arith.addf %98, %103 : vector<8x1xf32>
    %105 = math.rsqrt %104 : vector<8x1xf32>
    %106 = vector.broadcast %105 : vector<8x1xf32> to vector<8x44xf32>
    %107 = arith.mulf %102, %106 : vector<8x44xf32>
    %108 = vector.broadcast %15 : vector<1x44xf32> to vector<8x44xf32>
    %109 = arith.addf %107, %108 : vector<8x44xf32>
    %cst_31 = arith.constant 0.699999988 : f32
    %110 = vector.broadcast %cst_31 : f32 to vector<8x44xf32>
    %111 = arith.mulf %110, %109 : vector<8x44xf32>
    %cst_32 = arith.constant 3.000000e-01 : f32
    %112 = vector.broadcast %cst_32 : f32 to vector<8x44xf32>
    %113 = arith.mulf %112, %83 : vector<8x44xf32>
    %114 = arith.addf %111, %113 : vector<8x44xf32>
    %c0_33 = arith.constant 0 : index
    %c0_34 = arith.constant 0 : index
    %c0_35 = arith.constant 0 : index
    %115 = vector.load %arg5[%c0_33, %c0_34, %c0_35] : memref<1x8x44xf32, #tpu.memory_space<vmem>>, vector<1x8x44xf32>
    %116 = vector.shape_cast %115 : vector<1x8x44xf32> to vector<8x44xf32>
    %117 = vector.shape_cast %114 : vector<8x44xf32> to vector<1x8x44xf32>
    tpu.vector_store %arg5[%c0_33, %c0_34, %c0_35], %117 {strides = array<i32>} : memref<1x8x44xf32, #tpu.memory_space<vmem>>, vector<1x8x44xf32>,
    return
  }
  func.func @transform_0(%arg0: i32) -> (i32, i32, i32) {
    %c0_i32 = arith.constant 0 : i32
    %c0_i32_0 = arith.constant 0 : i32
    %c0_i32_1 = arith.constant 0 : i32
    return %arg0, %c0_i32, %c0_i32_0 : i32, i32, i32
  }
  func.func @transform_1(%arg0: i32) -> (i32, i32, i32) {
    %c0_i32 = arith.constant 0 : i32
    %c0_i32_0 = arith.constant 0 : i32
    %c0_i32_1 = arith.constant 0 : i32
    return %arg0, %c0_i32, %c0_i32_0 : i32, i32, i32
  }
  func.func @transform_2(%arg0: i32) -> (i32, i32) {
    %c0_i32 = arith.constant 0 : i32
    %c0_i32_0 = arith.constant 0 : i32
    %c0_i32_1 = arith.constant 0 : i32
    return %c0_i32, %c0_i32_0 : i32, i32
  }
  func.func @transform_3(%arg0: i32) -> (i32, i32) {
    %c0_i32 = arith.constant 0 : i32
    %c0_i32_0 = arith.constant 0 : i32
    %c0_i32_1 = arith.constant 0 : i32
    return %c0_i32, %c0_i32_0 : i32, i32
  }
  func.func @transform_4(%arg0: i32) -> (i32, i32, i32) {
    %c0_i32 = arith.constant 0 : i32
    %c0_i32_0 = arith.constant 0 : i32
    %c0_i32_1 = arith.constant 0 : i32
    return %arg0, %c0_i32, %c0_i32_0 : i32, i32, i32
  }
}

</mosaic_0001>

<llo_original>
// kernel: tpu_custom_call.1
$region0: #{tpu_custom_call.1}
  #allocation0 [shape = 'u32[]', space=smem, size = 0x4, offset = 0x4, fixed_abs, tag = 'smem constant byte address 0x4 - core index']
  #allocation1 [shape = 'u32[72,128]{1,0:T(1,128)}', space=vmem, size = 0x9000, scoped, tag = 'internal scratch']
  %s0 = inlined_call_operand.hbm [shape: f32[2,8,44], index: 0, kind: input, shape index: {}]
  %s1 = inlined_call_operand.hbm [shape: f32[2,1,8], index: 1, kind: input, shape index: {}]
  %s2 = inlined_call_operand.hbm [shape: f32[44,220], index: 2, kind: input, shape index: {}]
  %s3 = inlined_call_operand.hbm [shape: f32[3,132], index: 3, kind: input, shape index: {}]
  %s4 = inlined_call_operand.hbm [shape: f32[2,8,44], index: 4, kind: output, shape index: {}]
  %s5 = sld [smem:[#allocation0]]
  $region65: #{tpu_custom_call.1} parent=0
    _
  %s7 = ssub.s32 1, %s5
  %s8 = scalar_select 0, %s7, %s5
  $region1: #{tpu_custom_call.1} parent=0
    #allocation2 [shape = 'u8[8192]{0}', space=vmem, size = 0x2000, scoped, tag = 'input window, operand 0']
    #allocation3 [shape = 's32[2]{0}', space=sflag, size = 0x8, scoped, tag = 'scoped memory for tpu_custom_call.1']
    #allocation4 [shape = 's32[2]{0}', space=sflag, size = 0x8, scoped, tag = 'scoped memory for tpu_custom_call.1']
    #allocation5 [shape = 'u8[1024]{0}', space=vmem, size = 0x400, scoped, tag = 'input window, operand 1']
    #allocation6 [shape = 's32[2]{0}', space=sflag, size = 0x8, scoped, tag = 'scoped memory for tpu_custom_call.1']
    #allocation7 [shape = 'u8[49152]{0}', space=vmem, size = 0xc000, scoped, tag = 'input window, operand 2, single buffered']
    #allocation8 [shape = 'u8[4096]{0}', space=vmem, size = 0x1000, scoped, tag = 'input window, operand 3, single buffered']
    #allocation9 [shape = 's32[1]{0}', space=sflag, size = 0x4, scoped, tag = 'scoped memory for tpu_custom_call.1']
    #allocation10 [shape = 'u8[8192]{0}', space=vmem, size = 0x2000, scoped, tag = 'output window, operand 0']
    %9 = vsyncpa [#allocation3], 0
    %s10 = scalar_lea.sflag [#allocation3], 1
    %11 = vsyncpa %s10, 0
    %12 = vsyncpa [#allocation6], 0
    %s13 = scalar_lea.sflag [#allocation6], 1
    %14 = vsyncpa %s13, 0
    %15 = vsyncpa [#allocation9], 0
    %16 = vsyncpa [#allocation4], 0
    %s17 = scalar_lea.sflag [#allocation4], 1
    %18 = vsyncpa %s17, 0
    loop: start=0, step=1, limit=4
    $region2: #{tpu_custom_call.1} parent=1 // loop_pre_header
      _
    $region3: #{tpu_custom_call.1} parent=1 // loop_header
      %s20 = sphi 0, %s24
      %p21 = scmp.ge.s32.totalorder %s20, 4
      %s30 = sphi 0, %s32
      %s33 = sphi 0, %s30
      %s34 = sphi 0, %s33
      %s50 = sphi 0, %s34
      %s56 = sphi 0, %s58
      %s59 = sphi 0, %s56
      %s60 = sphi 0, %s59
      %s76 = sphi 0, %s60
      %s80 = sphi 0, %s80
      %s82 = sphi 0, %s80
      %s83 = sphi 0, %s82
      %s97 = sphi 0, %s83
      %s101 = sphi 0, %s101
      %s103 = sphi 0, %s101
      %s104 = sphi 0, %s103
      %s118 = sphi 0, %s104
      %s124 = sphi 0, %s126
      %s127 = sphi 0, %s124
      %s128 = sphi 0, %s127
      %s144 = sphi 0, %s128
    $region4: #{tpu_custom_call.1} parent=1 // loop_header_branch
      %23 = sbr.rel (%p21) target = $region8
    $region5: #{tpu_custom_call.1} parent=1 // loop_body
      %s25 = ssub.s32 %s20, 1
      %s26 = ssub.s32 %s20, 2
      %s27 = sadd.s32 %s20, 1
      %s28 = ssub.s32 %s20, %s27
      %p29 = scmp.eq.s32.totalorder %s28, 0
      %s31 = sadd.s32 %s30, 1
      %s32 = scalar_select %p29, %s30, %s31
      %p35 = pneg %p29
      %p36 = scmp.eq.s32.totalorder %s20, 1
      %p37 = por %p35, %p36
      %p38 = scmp.ne.s32.totalorder %s30, %s33
      %p39 = scmp.eq.s32.totalorder %s20, 0
      %p40 = por %p38, %p39
      %p41 = scmp.ne.s32.totalorder %s30, %s33
      %p42 = scmp.eq.s32.totalorder %s25, 1
      %p43 = por %p41, %p42
      %p44 = scmp.ne.s32.totalorder %s33, %s34
      %p45 = scmp.eq.s32.totalorder %s25, 0
      %p46 = por %p44, %p45
      %p47 = scmp.ne.s32.totalorder %s33, %s34
      %p48 = scmp.eq.s32.totalorder %s26, 1
      %p49 = por %p47, %p48
      %p51 = scmp.ne.s32.totalorder %s34, %s50
      %p52 = scmp.eq.s32.totalorder %s26, 0
      %p53 = por %p51, %p52
      %s54 = ssub.s32 %s20, %s27
      %p55 = scmp.eq.s32.totalorder %s54, 0
      %s57 = sadd.s32 %s56, 1
      %s58 = scalar_select %p55, %s56, %s57
      %p61 = pneg %p55
      %p62 = scmp.eq.s32.totalorder %s20, 1
      %p63 = por %p61, %p62
      %p64 = scmp.ne.s32.totalorder %s56, %s59
      %p65 = scmp.eq.s32.totalorder %s20, 0
      %p66 = por %p64, %p65
      %p67 = scmp.ne.s32.totalorder %s56, %s59
      %p68 = scmp.eq.s32.totalorder %s25, 1
      %p69 = por %p67, %p68
      %p70 = scmp.ne.s32.totalorder %s59, %s60
      %p71 = scmp.eq.s32.totalorder %s25, 0
      %p72 = por %p70, %p71
      %p73 = scmp.ne.s32.totalorder %s59, %s60
      %p74 = scmp.eq.s32.totalorder %s26, 1
      %p75 = por %p73, %p74
      %p77 = scmp.ne.s32.totalorder %s60, %s76
      %p78 = scmp.eq.s32.totalorder %s26, 0
      %p79 = por %p77, %p78
      %s81 = sadd.s32 %s80, 1
      %p84 = scmp.eq.s32.totalorder %s20, 1
      %p85 = scmp.ne.s32.totalorder %s80, %s82
      %p86 = scmp.eq.s32.totalorder %s20, 0
      %p87 = por %p85, %p86
      %p88 = scmp.ne.s32.totalorder %s80, %s82
      %p89 = scmp.eq.s32.totalorder %s25, 1
      %p90 = por %p88, %p89
      %p91 = scmp.ne.s32.totalorder %s82, %s83
      %p92 = scmp.eq.s32.totalorder %s25, 0
      %p93 = por %p91, %p92
      %p94 = scmp.ne.s32.totalorder %s82, %s83
      %p95 = scmp.eq.s32.totalorder %s26, 1
      %p96 = por %p94, %p95
      %p98 = scmp.ne.s32.totalorder %s83, %s97
      %p99 = scmp.eq.s32.totalorder %s26, 0
      %p100 = por %p98, %p99
      %s102 = sadd.s32 %s101, 1
      %p105 = scmp.eq.s32.totalorder %s20, 1
      %p106 = scmp.ne.s32.totalorder %s101, %s103
      %p107 = scmp.eq.s32.totalorder %s20, 0
      %p108 = por %p106, %p107
      %p109 = scmp.ne.s32.totalorder %s101, %s103
      %p110 = scmp.eq.s32.totalorder %s25, 1
      %p111 = por %p109, %p110
      %p112 = scmp.ne.s32.totalorder %s103, %s104
      %p113 = scmp.eq.s32.totalorder %s25, 0
      %p114 = por %p112, %p113
      %p115 = scmp.ne.s32.totalorder %s103, %s104
      %p116 = scmp.eq.s32.totalorder %s26, 1
      %p117 = por %p115, %p116
      %p119 = scmp.ne.s32.totalorder %s104, %s118
      %p120 = scmp.eq.s32.totalorder %s26, 0
      %p121 = por %p119, %p120
      %s122 = ssub.s32 %s20, %s27
      %p123 = scmp.eq.s32.totalorder %s122, 0
      %s125 = sadd.s32 %s124, 1
      %s126 = scalar_select %p123, %s124, %s125
      %p129 = pneg %p123
      %p130 = scmp.eq.s32.totalorder %s20, 1
      %p131 = por %p129, %p130
      %p132 = scmp.ne.s32.totalorder %s124, %s127
      %p133 = scmp.eq.s32.totalorder %s20, 0
      %p134 = por %p132, %p133
      %p135 = scmp.ne.s32.totalorder %s124, %s127
      %p136 = scmp.eq.s32.totalorder %s25, 1
      %p137 = por %p135, %p136
      %p138 = scmp.ne.s32.totalorder %s127, %s128
      %p139 = scmp.eq.s32.totalorder %s25, 0
      %p140 = por %p138, %p139
      %p141 = scmp.ne.s32.totalorder %s127, %s128
      %p142 = scmp.eq.s32.totalorder %s26, 1
      %p143 = por %p141, %p142
      %p145 = scmp.ne.s32.totalorder %s128, %s144
      %p146 = scmp.eq.s32.totalorder %s26, 0
      %p147 = por %p145, %p146
      %p148 = scmp.le.s32.totalorder 1, %s20
      %p149 = scmp.lt.s32.totalorder %s20, 3
      %p150 = pnand %p148, %p149
      %p151 = pneg %p150
      // Predicated region
      $region9: #{tpu_custom_call.1} parent=5 // pred_check
        _
      $region10: #{tpu_custom_call.1} parent=5 // pred_check_branch
        %153 = sbr.rel (%p150) target = $region12
      $region11: #{tpu_custom_call.1} parent=5 // pred_region
        %s154 = ssub.s32 %s20, 1
        // Predicated region
        $region13: #{tpu_custom_call.1} parent=11 // pred_check
          %p155 = pneg %p93
        $region14: #{tpu_custom_call.1} parent=11 // pred_check_branch
          %157 = sbr.rel (%p155) target = $region16
        $region15: #{tpu_custom_call.1} parent=11 // pred_region
          %159 = vsyncadd [#allocation6], 0
          %s160 = sshll.u32 %s2, 4
          %s161 = int_to_ptr.hbm [resolvable:$true] %s160
          %s162 = sshll.u32 [#allocation7], 4
          %s163 = int_to_ptr.vmem [resolvable:$true] %s162
          %168 = dma.hbm_to_vmem [thread:$0]  %s161, 1536, %s163, [#allocation6], 256, 256, 16
        $region16: #{tpu_custom_call.1} parent=11 // pred_fallthru
          _
        // Predicated region
        $region17: #{tpu_custom_call.1} parent=11 // pred_check
          %p169 = pneg %p114
        $region18: #{tpu_custom_call.1} parent=11 // pred_check_branch
          %171 = sbr.rel (%p169) target = $region20
        $region19: #{tpu_custom_call.1} parent=11 // pred_region
          %173 = vsyncadd [#allocation9], 0
          %s175 = sshll.u32 %s3, 4
          %s176 = int_to_ptr.hbm [resolvable:$true] %s175
          %s177 = sshll.u32 [#allocation8], 4
          %s178 = int_to_ptr.vmem [resolvable:$true] %s177
          %180 = dma.hbm_to_vmem [thread:$0]  %s176, 128, %s178, [#allocation9]
        $region20: #{tpu_custom_call.1} parent=11 // pred_fallthru
          _
      $region12: #{tpu_custom_call.1} parent=5 // pred_fallthru
        _
      %p181 = scmp.lt.s32.totalorder %s20, 2
      // Predicated region
      $region21: #{tpu_custom_call.1} parent=5 // pred_check
        %p182 = pneg %p181
      $region22: #{tpu_custom_call.1} parent=5 // pred_check_branch
        %184 = sbr.rel (%p182) target = $region24
      $region23: #{tpu_custom_call.1} parent=5 // pred_region
        // Predicated region
        $region25: #{tpu_custom_call.1} parent=23 // pred_check
          %p185 = pneg %p40
        $region26: #{tpu_custom_call.1} parent=23 // pred_check_branch
          %187 = sbr.rel (%p185) target = $region28
        $region27: #{tpu_custom_call.1} parent=23 // pred_region
          %s188 = sand.u32 %s30, 1
          %s189 = scalar_lea.sflag [#allocation3], %s188
          %s190 = sand.u32 %s30, 1
          %s191 = smul.addr %s190, 8
          %s192 = scalar_lea.vmem [#allocation2], %s191
          %194 = vsyncadd %s189, 0
          %s195 = smul.addr %s20, 8
          %s196 = scalar_lea.hbm %s0, %s195
          %s198 = sshll.u32 %s196, 4
          %s199 = int_to_ptr.hbm [resolvable:$true] %s198
          %s200 = sshll.u32 %s192, 4
          %s201 = int_to_ptr.vmem [resolvable:$true] %s200
          %203 = dma.hbm_to_vmem [thread:$0]  %s199, 128, %s201, %s189
        $region28: #{tpu_custom_call.1} parent=23 // pred_fallthru
          _
        // Predicated region
        $region29: #{tpu_custom_call.1} parent=23 // pred_check
          %p204 = pneg %p66
        $region30: #{tpu_custom_call.1} parent=23 // pred_check_branch
          %206 = sbr.rel (%p204) target = $region32
        $region31: #{tpu_custom_call.1} parent=23 // pred_region
          %s207 = sand.u32 %s20, 1
          %s208 = scalar_lea.sflag [#allocation6], %s207
          %s209 = sand.u32 %s56, 1
          %s210 = scalar_lea.vmem [#allocation5], %s209
          %212 = vsyncadd %s208, 0
          %s213 = scalar_lea.hbm %s1, %s20
          %s215 = sshll.u32 %s213, 4
          %s216 = int_to_ptr.hbm [resolvable:$true] %s215
          %s217 = sshll.u32 %s210, 4
          %s218 = int_to_ptr.vmem [resolvable:$true] %s217
          %220 = dma.hbm_to_vmem [thread:$0]  %s216, 16, %s218, %s208
        $region32: #{tpu_custom_call.1} parent=23 // pred_fallthru
          _
      $region24: #{tpu_custom_call.1} parent=5 // pred_fallthru
        _
      %p221 = scmp.le.s32.totalorder 1, %s20
      %p222 = scmp.lt.s32.totalorder %s20, 3
      %p223 = pnand %p221, %p222
      %p224 = pneg %p223
      // Predicated region
      $region33: #{tpu_custom_call.1} parent=5 // pred_check
        _
      $region34: #{tpu_custom_call.1} parent=5 // pred_check_branch
        %226 = sbr.rel (%p223) target = $region36
      $region35: #{tpu_custom_call.1} parent=5 // pred_region
        %s227 = ssub.s32 %s20, 1
        %s228 = sand.u32 %s33, 1
        %s229 = scalar_lea.sflag [#allocation3], %s228
        %s230 = sand.u32 %s33, 1
        %s231 = smul.addr %s230, 8
        %s232 = scalar_lea.vmem [#allocation2], %s231
        // Predicated region
        $region37: #{tpu_custom_call.1} parent=35 // pred_check
          %p233 = pneg %p46
        $region38: #{tpu_custom_call.1} parent=35 // pred_check_branch
          %235 = sbr.rel (%p233) target = $region40
        $region39: #{tpu_custom_call.1} parent=35 // pred_region
          %237 = dma.done %s229, 128
        $region40: #{tpu_custom_call.1} parent=35 // pred_fallthru
          _
        %s238 = sand.u32 %s25, 1
        %s239 = scalar_lea.sflag [#allocation6], %s238
        %s240 = sand.u32 %s59, 1
        %s241 = scalar_lea.vmem [#allocation5], %s240
        // Predicated region
        $region41: #{tpu_custom_call.1} parent=35 // pred_check
          %p242 = pneg %p72
        $region42: #{tpu_custom_call.1} parent=35 // pred_check_branch
          %244 = sbr.rel (%p242) target = $region44
        $region43: #{tpu_custom_call.1} parent=35 // pred_region
          %246 = dma.done %s239, 16
        $region44: #{tpu_custom_call.1} parent=35 // pred_fallthru
          _
        // Predicated region
        $region45: #{tpu_custom_call.1} parent=35 // pred_check
          %p247 = pneg %p93
        $region46: #{tpu_custom_call.1} parent=35 // pred_check_branch
          %249 = sbr.rel (%p247) target = $region48
        $region47: #{tpu_custom_call.1} parent=35 // pred_region
          %251 = dma.done [#allocation6], 1536
        $region48: #{tpu_custom_call.1} parent=35 // pred_fallthru
          _
        // Predicated region
        $region49: #{tpu_custom_call.1} parent=35 // pred_check
          %p252 = pneg %p114
        $region50: #{tpu_custom_call.1} parent=35 // pred_check_branch
          %254 = sbr.rel (%p252) target = $region52
        $region51: #{tpu_custom_call.1} parent=35 // pred_region
          %256 = dma.done [#allocation9], 128
        $region52: #{tpu_custom_call.1} parent=35 // pred_fallthru
          _
        %s257 = sand.u32 %s33, 1
        %s258 = scalar_lea.sflag [#allocation3], %s257
        %s259 = sand.u32 %s33, 1
        %s260 = smul.addr %s259, 8
        %s261 = scalar_lea.vmem [#allocation2], %s260
        %p262 = pneg %p46
        %p263 = pneg %p43
        %s264 = sand.u32 %s25, 1
        %s265 = scalar_lea.sflag [#allocation6], %s264
        %s266 = sand.u32 %s59, 1
        %s267 = scalar_lea.vmem [#allocation5], %s266
        %p268 = pneg %p72
        %p269 = pneg %p69
        %p270 = pneg %p93
        %p271 = pneg %p90
        %p272 = pneg %p114
        %p273 = pneg %p111
        %p274 = pneg %p140
        %p275 = pneg %p137
        %s276 = sand.u32 %s127, 1
        %s277 = scalar_lea.sflag [#allocation4], %s276
        %s278 = sand.u32 %s127, 1
        %s279 = smul.addr %s278, 8
        %s280 = scalar_lea.vmem [#allocation10], %s279
        %v281 = vld [vmem:[%s232] sm:$0xff]
        %v282 = vld [vmem:[%s241] sm:$0x1]
        %v283 = vld [vmem:[#allocation7] sm:$0xff]
        %v284 = vld [vmem:[#allocation7 + $0x8] sm:$0xff]
        %v285 = vld [vmem:[#allocation7 + $0x10] sm:$0xff]
        %v286 = vld [vmem:[#allocation7 + $0x18] sm:$0xff]
        %v287 = vld [vmem:[#allocation7 + $0x20] sm:$0xff]
        %v288 = vld [vmem:[#allocation7 + $0x28] sm:$0xff]
        %v289 = vld [vmem:[#allocation7 + $0x30] sm:$0xff]
        %v290 = vld [vmem:[#allocation7 + $0x38] sm:$0xff]
        %v291 = vld [vmem:[#allocation7 + $0x40] sm:$0xff]
        %v292 = vld [vmem:[#allocation7 + $0x48] sm:$0xff]
        %v293 = vld [vmem:[#allocation7 + $0x50] sm:$0xf]
        %v294 = vld [vmem:[#allocation7 + $0x58] sm:$0xf]
        %v295 = vld [vmem:[#allocation8] sm:$0x77]
        %v297 = vperm.slane %v295, 0
        %v298 = vperm.slane %v295, 4
        %v301 = vperm.slane %v297, 0
        %v302 = vperm.slane %v298, 0
        %vm303 = vcmask 359424
        %v305 = vsel %vm303, %v281, 0
        %vm307 = vcmask 1043456
        %v309 = vsel %vm307, %v293, 0
        %v312 = vsel %vm307, %v294, 0
        %314 = vmatpush.msra.mxu0 0.0
        %315 = vmatpush.msra.mxu0 0.0
        %316 = vmatpush.msra.mxu0 0.0
        %317 = vmatpush.msra.mxu0 0.0
        %318 = vmatpush.msra.mxu0 0.0
        %319 = vmatpush.msra.mxu0 0.0
        %320 = vmatpush.msra.mxu0 0.0
        %321 = vmatpush.msra.mxu0 0.0
        %322 = vmatpush.msra.mxu0 0.0
        %323 = vmatpush.msra.mxu0 0.0
        %324 = vmatpush.msra.mxu0 %v309
        %325 = vmatpush.msra.mxu0 %v291
        %326 = vmatpush.msra.mxu0 %v289
        %327 = vmatpush.msra.mxu0 %v287
        %328 = vmatpush.msra.mxu0 %v285
        %329 = vmatpush.msra.mxu0 %v283
        %330 = vmatmul.f32.gmra.mxu0 %v305
        %v331 = vpop.f32.mrf.mxu0
        %v332 = vadd.f32 %v301, %v331
        %333 = vdwg.mxu0
        %334 = vmatpush.msra.mxu0 0.0
        %335 = vmatpush.msra.mxu0 0.0
        %336 = vmatpush.msra.mxu0 0.0
        %337 = vmatpush.msra.mxu0 0.0
        %338 = vmatpush.msra.mxu0 0.0
        %339 = vmatpush.msra.mxu0 0.0
        %340 = vmatpush.msra.mxu0 0.0
        %341 = vmatpush.msra.mxu0 0.0
        %342 = vmatpush.msra.mxu0 0.0
        %343 = vmatpush.msra.mxu0 0.0
        %344 = vmatpush.msra.mxu0 %v312
        %345 = vmatpush.msra.mxu0 %v292
        %346 = vmatpush.msra.mxu0 %v290
        %347 = vmatpush.msra.mxu0 %v288
        %348 = vmatpush.msra.mxu0 %v286
        %349 = vmatpush.msra.mxu0 %v284
        %350 = vmatmul.f32.gmra.mxu0 %v305
        %v351 = vpop.f32.mrf.mxu0
        %v352 = vadd.f32 %v302, %v351
        %353 = vdwg.mxu0
        %355 = vrot.lane.b32.xlu0 %v332, 84
        %v356 = vpop.permute.xlu0 %355
        %vm357 = vcmask 179200
        %v358 = vsel %vm357, %v332, 0
        %v360 = vsel %vm357, %v356, 0
        %362 = vmatpush.xpose.msra.mxu0 0.0
        %363 = vmatpush.xpose.msra.mxu0 0.0
        %364 = vmatpush.xpose.msra.mxu0 0.0
        %365 = vmatpush.xpose.msra.mxu0 0.0
        %366 = vmatpush.xpose.msra.mxu0 0.0
        %367 = vmatpush.xpose.msra.mxu0 0.0
        %368 = vmatpush.xpose.msra.mxu0 0.0
        %369 = vmatpush.xpose.msra.mxu0 0.0
        %370 = vmatpush.xpose.msra.mxu0 0.0
        %371 = vmatpush.xpose.msra.mxu0 0.0
        %372 = vmatpush.xpose.msra.mxu0 0.0
        %373 = vmatpush.xpose.msra.mxu0 0.0
        %374 = vmatpush.xpose.msra.mxu0 0.0
        %375 = vmatpush.xpose.msra.mxu0 0.0
        %376 = vmatpush.xpose.msra.mxu0 0.0
        %377 = vmatpush.xpose.msra.mxu0 %v360
        %378 = vmatmul.f32.gmra.mxu0 %v358
        %v379 = vpop.f32.mrf.mxu0
        %v380 = vadd.f32 0.0, %v379
        %381 = vdwg.mxu0
        %v382 = vmul.f32 %v380, 0.21320072
        %v384 = vperm.slane %v282, 0
        %v386 = vadd.f32 %v382, %v384
        %vm387 = vcmask 64512
        %v388 = vsel %vm387, %v386, -inf
        %389 = vmax.xlane.f32.xlu0 %v388
        %v390 = vpop.xlane.xlu0 %389
        %v391 = vsub.f32 %v386, %v390
        %v392 = vmul.f32 %v391, 1.442695
        %v393 = vpow.pop %v392
        %v394 = vsel %vm387, %v393, 0.0
        %395 = vadd.xlane.f32.xlu0 %v394
        %v396 = vpop.xlane.xlu0 %395
        %v397 = vrcp.pop %v396
        %v398 = vmul.f32 %v393, %v397
        %399 = vrot.lane.b32.xlu0 %v332, 40
        %v400 = vpop.permute.xlu0 %399
        %v403 = vsel %vm387, %v398, 0
        %405 = vmatpush.msra.mxu0 0.0
        %406 = vmatpush.msra.mxu0 0.0
        %407 = vmatpush.msra.mxu0 0.0
        %408 = vmatpush.msra.mxu0 0.0
        %409 = vmatpush.msra.mxu0 0.0
        %410 = vmatpush.msra.mxu0 0.0
        %411 = vmatpush.msra.mxu0 0.0
        %412 = vmatpush.msra.mxu0 0.0
        %413 = vmatpush.msra.mxu0 0.0
        %414 = vmatpush.msra.mxu0 0.0
        %415 = vmatpush.msra.mxu0 0.0
        %416 = vmatpush.msra.mxu0 0.0
        %417 = vmatpush.msra.mxu0 0.0
        %418 = vmatpush.msra.mxu0 0.0
        %419 = vmatpush.msra.mxu0 0.0
        %420 = vmatpush.msra.mxu0 %v400
        %421 = vmatmul.f32.gmra.mxu0 %v403
        %v422 = vpop.f32.mrf.mxu0
        %v423 = vadd.f32 0.0, %v422
        %424 = vdwg.mxu0
        %425 = vrot.lane.b32.xlu0 %v332, 106
        %v426 = vpop.permute.xlu0 %425
        %427 = vrot.lane.b32.xlu0 %v332, 62
        %v428 = vpop.permute.xlu0 %427
        %v429 = vsel %vm357, %v426, 0
        %v431 = vsel %vm357, %v428, 0
        %433 = vmatpush.xpose.msra.mxu0 0.0
        %434 = vmatpush.xpose.msra.mxu0 0.0
        %435 = vmatpush.xpose.msra.mxu0 0.0
        %436 = vmatpush.xpose.msra.mxu0 0.0
        %437 = vmatpush.xpose.msra.mxu0 0.0
        %438 = vmatpush.xpose.msra.mxu0 0.0
        %439 = vmatpush.xpose.msra.mxu0 0.0
        %440 = vmatpush.xpose.msra.mxu0 0.0
        %441 = vmatpush.xpose.msra.mxu0 0.0
        %442 = vmatpush.xpose.msra.mxu0 0.0
        %443 = vmatpush.xpose.msra.mxu0 0.0
        %444 = vmatpush.xpose.msra.mxu0 0.0
        %445 = vmatpush.xpose.msra.mxu0 0.0
        %446 = vmatpush.xpose.msra.mxu0 0.0
        %447 = vmatpush.xpose.msra.mxu0 0.0
        %448 = vmatpush.xpose.msra.mxu0 %v431
        %449 = vmatmul.f32.gmra.mxu0 %v429
        %v450 = vpop.f32.mrf.mxu0
        %v451 = vadd.f32 0.0, %v450
        %452 = vdwg.mxu0
        %v453 = vmul.f32 %v451, 0.21320072
        %v454 = vadd.f32 %v453, %v384
        %v455 = vsel %vm387, %v454, -inf
        %456 = vmax.xlane.f32.xlu0 %v455
        %v457 = vpop.xlane.xlu0 %456
        %v458 = vsub.f32 %v454, %v457
        %v459 = vmul.f32 %v458, 1.442695
        %v460 = vpow.pop %v459
        %v461 = vsel %vm387, %v460, 0.0
        %462 = vadd.xlane.f32.xlu0 %v461
        %v463 = vpop.xlane.xlu0 %462
        %v464 = vrcp.pop %v463
        %v465 = vmul.f32 %v460, %v464
        %467 = vrot.lane.b32.xlu0 %v332, 18
        %v468 = vpop.permute.xlu0 %467
        %469 = vrot.lane.b32.xlu0 %v352, 18
        %v470 = vpop.permute.xlu0 %469
        %vm471 = vcmask 146432
        %v472 = vsel %vm471, %v468, %v470
        %v475 = vsel %vm387, %v465, 0
        %477 = vmatpush.msra.mxu0 0.0
        %478 = vmatpush.msra.mxu0 0.0
        %479 = vmatpush.msra.mxu0 0.0
        %480 = vmatpush.msra.mxu0 0.0
        %481 = vmatpush.msra.mxu0 0.0
        %482 = vmatpush.msra.mxu0 0.0
        %483 = vmatpush.msra.mxu0 0.0
        %484 = vmatpush.msra.mxu0 0.0
        %485 = vmatpush.msra.mxu0 0.0
        %486 = vmatpush.msra.mxu0 0.0
        %487 = vmatpush.msra.mxu0 0.0
        %488 = vmatpush.msra.mxu0 0.0
        %489 = vmatpush.msra.mxu0 0.0
        %490 = vmatpush.msra.mxu0 0.0
        %491 = vmatpush.msra.mxu0 0.0
        %492 = vmatpush.msra.mxu0 %v472
        %493 = vmatmul.f32.gmra.mxu0 %v475
        %v494 = vpop.f32.mrf.mxu0
        %v495 = vadd.f32 0.0, %v494
        %496 = vdwg.mxu0
        %498 = vrot.lane.b32.xlu0 %v495, 22
        %v499 = vpop.permute.xlu0 %498
        %v501 = vsel %vm357, %v423, %v499
        %v502 = vperm.slane %v295, 1
        %508 = vrot.lane.b32.xlu0 %v284, 124
        %v509 = vpop.permute.xlu0 %508
        %510 = vrot.lane.b32.xlu0 %v286, 124
        %v511 = vpop.permute.xlu0 %510
        %512 = vrot.lane.b32.xlu0 %v288, 124
        %v513 = vpop.permute.xlu0 %512
        %514 = vrot.lane.b32.xlu0 %v290, 124
        %v515 = vpop.permute.xlu0 %514
        %516 = vrot.lane.b32.xlu0 %v292, 124
        %v517 = vpop.permute.xlu0 %516
        %518 = vrot.lane.b32.xlu0 %v294, 124
        %v519 = vpop.permute.xlu0 %518
        %v526 = vsel %vm303, %v501, 0
        %v528 = vsel %vm307, %v519, 0
        %530 = vmatpush.msra.mxu0 0.0
        %531 = vmatpush.msra.mxu0 0.0
        %532 = vmatpush.msra.mxu0 0.0
        %533 = vmatpush.msra.mxu0 0.0
        %534 = vmatpush.msra.mxu0 0.0
        %535 = vmatpush.msra.mxu0 0.0
        %536 = vmatpush.msra.mxu0 0.0
        %537 = vmatpush.msra.mxu0 0.0
        %538 = vmatpush.msra.mxu0 0.0
        %539 = vmatpush.msra.mxu0 0.0
        %540 = vmatpush.msra.mxu0 %v528
        %541 = vmatpush.msra.mxu0 %v517
        %542 = vmatpush.msra.mxu0 %v515
        %543 = vmatpush.msra.mxu0 %v513
        %544 = vmatpush.msra.mxu0 %v511
        %545 = vmatpush.msra.mxu0 %v509
        %546 = vmatmul.f32.gmra.mxu0 %v526
        %v547 = vpop.f32.mrf.mxu0
        %v548 = vadd.f32 %v502, %v547
        %549 = vdwg.mxu0
        %v550 = vadd.f32 %v548, %v281
        %v551 = vsel %vm303, %v550, 0.0
        %552 = vadd.xlane.f32.xlu0 %v551
        %v553 = vpop.xlane.xlu0 %552
        %v554 = vrcp.pop 44.0
        %v555 = vmul.f32 44.0, %v554
        %v556 = vsub.f32 1.0, %v555
        %v557 = vmul.f32 %v554, %v556
        %v558 = vadd.f32 %v554, %v557
        %vm559 = vweird.f32 %v554
        %v560 = vsel %vm559, %v554, %v558
        %v561 = vmul.f32 %v553, %v560
        %v562 = vsub.f32 %v550, %v561
        %v563 = vmul.f32 %v562, %v562
        %v564 = vsel %vm303, %v563, 0.0
        %565 = vadd.xlane.f32.xlu0 %v564
        %v566 = vpop.xlane.xlu0 %565
        %v567 = vmul.f32 %v566, %v560
        %569 = vrot.lane.b32.xlu0 %v562, 44
        %v570 = vpop.permute.xlu0 %569
        %v572 = vmul.f32 %v502, %v570
        %v573 = vadd.f32 %v567, 1e-12
        %v574 = vrsqrt.pop %v573
        %v575 = vmul.f32 %v574, %v573
        %v576 = vmul.f32 %v575, %v574
        %v577 = vmul.f32 0.5, %v576
        %v578 = vsub.f32 1.5, %v577
        %v579 = vmul.f32 %v574, %v578
        %vm580 = vweird.f32 %v573
        %vm581 = vweird.f32 %v574
        %vm582 = vmor %vm580, %vm581
        %v583 = vsel %vm582, %v574, %v579
        %v584 = vmul.f32 %v572, %v583
        %v585 = vperm.slane %v295, 1
        %v586 = vperm.slane %v295, 5
        %v589 = vperm.slane %v585, 1
        %v590 = vperm.slane %v586, 1
        %593 = vrot.lane.b32.xlu0 %v589, 84
        %v594 = vpop.permute.xlu0 %593
        %595 = vrot.lane.b32.xlu0 %v590, 84
        %v596 = vpop.permute.xlu0 %595
        %vm597 = vcmask 687104
        %v598 = vsel %vm597, %v594, %v596
        %v600 = vadd.f32 %v584, %v598
        %v601 = vperm.slane %v295, 2
        %602 = vrot.lane.b32.xlu0 %v284, 80
        %v603 = vpop.permute.xlu0 %602
        %604 = vrot.lane.b32.xlu0 %v286, 80
        %v605 = vpop.permute.xlu0 %604
        %606 = vrot.lane.b32.xlu0 %v288, 80
        %v607 = vpop.permute.xlu0 %606
        %608 = vrot.lane.b32.xlu0 %v290, 80
        %v609 = vpop.permute.xlu0 %608
        %610 = vrot.lane.b32.xlu0 %v292, 80
        %v611 = vpop.permute.xlu0 %610
        %612 = vrot.lane.b32.xlu0 %v294, 80
        %v613 = vpop.permute.xlu0 %612
        %v619 = vsel %vm307, %v613, 0
        %621 = vmatpush.msra.mxu0 0.0
        %622 = vmatpush.msra.mxu0 0.0
        %623 = vmatpush.msra.mxu0 0.0
        %624 = vmatpush.msra.mxu0 0.0
        %625 = vmatpush.msra.mxu0 0.0
        %626 = vmatpush.msra.mxu0 0.0
        %627 = vmatpush.msra.mxu0 0.0
        %628 = vmatpush.msra.mxu0 0.0
        %629 = vmatpush.msra.mxu0 0.0
        %630 = vmatpush.msra.mxu0 0.0
        %631 = vmatpush.msra.mxu0 %v619
        %632 = vmatpush.msra.mxu0 %v611
        %633 = vmatpush.msra.mxu0 %v609
        %634 = vmatpush.msra.mxu0 %v607
        %635 = vmatpush.msra.mxu0 %v605
        %636 = vmatpush.msra.mxu0 %v603
        %637 = vmatmul.f32.gmra.mxu0 %v305
        %v638 = vpop.f32.mrf.mxu0
        %v639 = vadd.f32 %v601, %v638
        %640 = vdwg.mxu0
        %v641 = vadd.f32 %v639, %v281
        %v642 = vsel %vm303, %v641, 0.0
        %643 = vadd.xlane.f32.xlu0 %v642
        %v644 = vpop.xlane.xlu0 %643
        %v645 = vmul.f32 %v644, %v560
        %v646 = vsub.f32 %v641, %v645
        %v647 = vmul.f32 %v646, %v646
        %v648 = vsel %vm303, %v647, 0.0
        %649 = vadd.xlane.f32.xlu0 %v648
        %v650 = vpop.xlane.xlu0 %649
        %v651 = vmul.f32 %v650, %v560
        %653 = vrot.lane.b32.xlu0 %v646, 44
        %v654 = vpop.permute.xlu0 %653
        %v656 = vmul.f32 %v601, %v654
        %v657 = vadd.f32 %v651, 1e-12
        %v658 = vrsqrt.pop %v657
        %v659 = vmul.f32 %v658, %v657
        %v660 = vmul.f32 %v659, %v658
        %v661 = vmul.f32 0.5, %v660
        %v662 = vsub.f32 1.5, %v661
        %v663 = vmul.f32 %v658, %v662
        %vm664 = vweird.f32 %v657
        %vm665 = vweird.f32 %v658
        %vm666 = vmor %vm664, %vm665
        %v667 = vsel %vm666, %v658, %v663
        %v668 = vmul.f32 %v656, %v667
        %v669 = vperm.slane %v295, 2
        %v670 = vperm.slane %v295, 6
        %v673 = vperm.slane %v669, 2
        %v674 = vperm.slane %v670, 2
        %677 = vrot.lane.b32.xlu0 %v673, 84
        %v678 = vpop.permute.xlu0 %677
        %679 = vrot.lane.b32.xlu0 %v674, 84
        %v680 = vpop.permute.xlu0 %679
        %v681 = vsel %vm597, %v678, %v680
        %v683 = vadd.f32 %v668, %v681
        %v684 = vmul.f32 %v683, 0.7
        %v685 = vmul.f32 %v600, 0.3
        %v686 = vadd.f32 %v684, %v685
        %688 = vrot.lane.b32.xlu0 %v686, 84
        %v689 = vpop.permute.xlu0 %688
        %691 = vst.msk [vmem:[%s280] sm:$0xff] %vm303, %v689
        %s692 = sand.u32 %s127, 1
        %s693 = scalar_lea.sflag [#allocation4], %s692
        %s694 = sand.u32 %s127, 1
        %s695 = smul.addr %s694, 8
        %s696 = scalar_lea.vmem [#allocation10], %s695
        // Predicated region
        $region53: #{tpu_custom_call.1} parent=35 // pred_check
          %p697 = pneg %p137
        $region54: #{tpu_custom_call.1} parent=35 // pred_check_branch
          %699 = sbr.rel (%p697) target = $region56
        $region55: #{tpu_custom_call.1} parent=35 // pred_region
          %701 = vsyncadd %s693, 0
          %s702 = smul.addr %s25, 8
          %s703 = scalar_lea.hbm %s4, %s702
          %s705 = sshll.u32 %s696, 4
          %s706 = int_to_ptr.vmem [resolvable:$true] %s705
          %s707 = sshll.u32 %s703, 4
          %s708 = int_to_ptr.hbm [resolvable:$true] %s707
          %710 = dma.vmem_to_hbm [thread:$0]  %s706, 128, %s708, %s693
        $region56: #{tpu_custom_call.1} parent=35 // pred_fallthru
          _
      $region36: #{tpu_custom_call.1} parent=5 // pred_fallthru
        _
      %p711 = scmp.le.s32.totalorder 2, %s20
      // Predicated region
      $region57: #{tpu_custom_call.1} parent=5 // pred_check
        %p712 = pneg %p711
      $region58: #{tpu_custom_call.1} parent=5 // pred_check_branch
        %714 = sbr.rel (%p712) target = $region60
      $region59: #{tpu_custom_call.1} parent=5 // pred_region
        %s715 = ssub.s32 %s20, 2
        // Predicated region
        $region61: #{tpu_custom_call.1} parent=59 // pred_check
          %p716 = pneg %p143
        $region62: #{tpu_custom_call.1} parent=59 // pred_check_branch
          %718 = sbr.rel (%p716) target = $region64
        $region63: #{tpu_custom_call.1} parent=59 // pred_region
          %s719 = sand.u32 %s128, 1
          %s720 = scalar_lea.sflag [#allocation4], %s719
          %s721 = sand.u32 %s128, 1
          %s722 = smul.addr %s721, 8
          %s723 = scalar_lea.vmem [#allocation10], %s722
          %725 = dma.done %s720, 128
        $region64: #{tpu_custom_call.1} parent=59 // pred_fallthru
          _
      $region60: #{tpu_custom_call.1} parent=5 // pred_fallthru
        _
    $region6: #{tpu_custom_call.1} parent=1 // loop_footer
      %s24 = sadd.s32 1, %s20
    $region7: #{tpu_custom_call.1} parent=1 // loop_footer_branch
      %19 = sbr.rel target = $region3
    $region8: #{tpu_custom_call.1} parent=1 // loop_exit
      _
    %726 = vsyncpa [#allocation3], 1
    %s727 = scalar_lea.sflag [#allocation3], 1
    %728 = vsyncpa %s727, 1
    %729 = vsyncpa [#allocation6], 1
    %s730 = scalar_lea.sflag [#allocation6], 1
    %731 = vsyncpa %s730, 1
    %732 = vsyncpa [#allocation9], 1
    %733 = vsyncpa [#allocation4], 1
    %s734 = scalar_lea.sflag [#allocation4], 1
    %735 = vsyncpa %s734, 1

</llo_original>
